<compile_context>
chip_gen: v5e
topology: v5e:2x2
jax: 0.10.0
libtpu: 0.0.40
codegen_flags: <defaults>
</compile_context>

<pallas_src>
import functools

import jax
import jax.numpy as jnp
import numpy as np
from jax.experimental import pallas as pl
from jax.experimental.pallas import tpu as pltpu


# --------------------------------------------------------------------------- #
# Kernel 1: teacher pass (per-tile softmax stats + center EMA)                 #
# --------------------------------------------------------------------------- #
def _teacher_stats_kernel(inv_temp_ref,      # (1,)       SMEM  1/teacher_temp
                          teacher_ref,       # (2B, TD)   VMEM  teacher tile
                          center_ref,        # (1, TD)    VMEM  center tile
                          t_max_ref,         # (1, 2B, 1) VMEM  per-tile row max
                          t_sum_ref,         # (1, 2B, 1) VMEM  per-tile exp-sum
                          new_center_ref,    # (1, TD)    VMEM  updated center tile
                          *, two_b, center_momentum):
    c = center_ref[...]                                      # (1, TD) f32
    t_raw = teacher_ref[...].astype(jnp.float32)             # (2B, TD)
    t = (t_raw - c) * inv_temp_ref[0]

    # center EMA: columnwise mean of raw teacher logits (independent per tile)
    batch_center = jnp.sum(t_raw, axis=0, keepdims=True) * (1.0 / two_b)
    new_center_ref[...] = (c * center_momentum
                           + batch_center * (1.0 - center_momentum))

    # per-tile softmax statistics; combined across tiles outside the kernel
    m = jnp.max(t, axis=-1, keepdims=True)                   # (2B, 1)
    z = jnp.sum(jnp.exp(t - m), axis=-1, keepdims=True)      # (2B, 1)
    t_max_ref[0] = m
    t_sum_ref[0] = z


# --------------------------------------------------------------------------- #
# Kernel 2: student/cross pass (weighted-dot partials + student LSE stats)     #
# --------------------------------------------------------------------------- #
def _cross_term_kernel(inv_temp_ref,         # (1,)        SMEM
                       teacher_ref,          # (2B, TD)    VMEM teacher tile
                       student_ref,          # (S,  TD)    VMEM all crops, one tile
                       center_ref,           # (1,  TD)    VMEM center tile
                       t_lse_ref,            # (2B, 1)     VMEM teacher log-normalizer
                       dot_ref,              # (1, B, 128) VMEM weighted-dot partial
                       s_max_ref,            # (1, S, 1)   VMEM per-tile student max
                       s_sum_ref,            # (1, S, 1)   VMEM per-tile student exp-sum
                       *, ncrops, batch_size, inv_student_temp):
    B = batch_size
    t = (teacher_ref[...].astype(jnp.float32) - center_ref[...]) * inv_temp_ref[0]
    q = jnp.exp(t - t_lse_ref[...])                          # (2B, TD) teacher softmax
    s = student_ref[...].astype(jnp.float32) * inv_student_temp  # (S, TD)

    # per-tile student softmax stats (for the log-sum-exp correction term)
    s_m = jnp.max(s, axis=-1, keepdims=True)
    s_z = jnp.sum(jnp.exp(s - s_m), axis=-1, keepdims=True)
    s_max_ref[0] = s_m
    s_sum_ref[0] = s_z

    # Collapsed cross terms: crop0 pairs with q1, crop1 with q0, local crops
    # with q0+q1.  Because sum_d(q)=1, the student LSE contributes a per-row
    # constant handled outside; only the weighted dot is accumulated here.
    q0 = q[:B]
    q1 = q[B:]
    w = q1 * s[:B]
    if ncrops >= 2:
        w = w + q0 * s[B:2 * B]
    if ncrops >= 3:
        s_local = s[2 * B:3 * B]
        for v in range(3, ncrops):
            s_local = s_local + s[v * B:(v + 1) * B]
        w = w + (q0 + q1) * s_local

    # Fold lanes into a 128-wide partial with aligned VALU adds (no XLU reduce,
    # no masked scalar store); the final reduction happens outside the kernel.
    td = w.shape[-1]
    part = w[:, :128]
    for k in range(1, td // 128):
        part = part + w[:, k * 128:(k + 1) * 128]
    dot_ref[0] = part


# --------------------------------------------------------------------------- #
# Host-side wrapper                                                            #
# --------------------------------------------------------------------------- #
def _pick_feature_tile(D, rows, itemsize, vmem_budget, requested):
    """Largest multiple-of-128 tile that divides D and fits the VMEM budget."""
    assert D % 128 == 0
    if requested is not None:
        assert requested % 128 == 0 and D % requested == 0
        return int(requested)
    denom = max(1, 4 * rows * itemsize)          # 2x double-buffer, 2x headroom
    td_cap = max(128, min(8192, (vmem_budget // denom) // 128 * 128))
    n_lane_tiles = D // 128
    for nd in range(1, n_lane_tiles + 1):
        if n_lane_tiles % nd == 0 and (D // nd) <= td_cap:
            return D // nd
    return 128


@functools.partial(jax.jit, static_argnames=("ncrops", "student_temp",
                                              "center_momentum", "feature_tile"))
def _dino_loss_forward(student_output, teacher_output, center, teacher_temp,
                       *, ncrops, student_temp, center_momentum,
                       feature_tile=None):
    S, D = student_output.shape
    two_b, _ = teacher_output.shape
    B = S // ncrops
    n_terms = 2 * ncrops - min(ncrops, 2)
    itemsize = jnp.dtype(student_output.dtype).itemsize

    # Per-generation VMEM budget (v5e/v6e: 128 MiB, v7x: 64 MiB per core).
    try:
        vmem_cap = int(getattr(pltpu.get_tpu_info(), "vmem_capacity_bytes", 0)) \
            or (64 << 20)
    except Exception:
        vmem_cap = 64 << 20
    vmem_budget = max(vmem_cap - (16 << 20), 8 << 20)

    TD = _pick_feature_tile(D, S + two_b + 1, itemsize, vmem_budget, feature_tile)
    n_dtiles = D // TD

    # VMEM actually needed (kernel 2 dominates): double-buffered streamed tiles
    # + the single-buffered t_lse + the small per-tile outputs.
    stream = 2 * ((S + two_b) * TD * itemsize + TD * 4)
    needed = (stream + two_b * 4
              + 2 * (B * 128 + 2 * S + 2 * two_b) * 4
              + 2 * TD * 4 + (1 << 20))
    vmem_limit = int(max(min(needed + (8 << 20), vmem_cap - (2 << 20)),
                         needed, 16 << 20))

    # per-epoch temperature as a traced SMEM scalar -> no recompile per epoch
    inv_temp = jnp.reshape(1.0 / teacher_temp.astype(jnp.float32), (1,))

    # ---------------- kernel 1: teacher stats + center EMA ---------------- #
    t_max_p, t_sum_p, new_center = pl.pallas_call(
        functools.partial(_teacher_stats_kernel, two_b=two_b,
                          center_momentum=float(center_momentum)),
        grid_spec=pltpu.PrefetchScalarGridSpec(
            num_scalar_prefetch=1,
            grid=(n_dtiles,),
            in_specs=[
                pl.BlockSpec((two_b, TD), lambda d, it: (0, d)),
                pl.BlockSpec((1, TD), lambda d, it: (0, d)),
            ],
            out_specs=(
                pl.BlockSpec((1, two_b, 1), lambda d, it: (d, 0, 0)),
                pl.BlockSpec((1, two_b, 1), lambda d, it: (d, 0, 0)),
                pl.BlockSpec((1, TD), lambda d, it: (0, d)),
            ),
        ),
        out_shape=(
            jax.ShapeDtypeStruct((n_dtiles, two_b, 1), jnp.float32),
            jax.ShapeDtypeStruct((n_dtiles, two_b, 1), jnp.float32),
            jax.ShapeDtypeStruct((1, D), jnp.float32),
        ),
        compiler_params=pltpu.CompilerParams(
            dimension_semantics=("parallel",),
            vmem_limit_bytes=vmem_limit),
        cost_estimate=pl.CostEstimate(
            flops=int(6 * two_b * D),
            transcendentals=int(two_b * D),
            bytes_accessed=int(two_b * D * itemsize + 3 * D * 4)),
    )(inv_temp, teacher_output, center)

    # combine per-tile teacher stats into the per-row log-normalizer (tiny)
    t_m = jnp.max(t_max_p, axis=0)                                   # (2B, 1)
    t_z = jnp.sum(t_sum_p * jnp.exp(t_max_p - t_m), axis=0)          # (2B, 1)
    t_lse = t_m + jnp.log(t_z)                                       # (2B, 1)

    # ---------------- kernel 2: streamed cross-term partials --------------- #
    dot_p, s_max_p, s_sum_p = pl.pallas_call(
        functools.partial(_cross_term_kernel, ncrops=ncrops, batch_size=B,
                          inv_student_temp=float(1.0 / student_temp)),
        grid_spec=pltpu.PrefetchScalarGridSpec(
            num_scalar_prefetch=1,
            grid=(n_dtiles,),
            in_specs=[
                pl.BlockSpec((two_b, TD), lambda d, it: (0, d)),
                pl.BlockSpec((S, TD), lambda d, it: (0, d)),
                pl.BlockSpec((1, TD), lambda d, it: (0, d)),
                pl.BlockSpec((two_b, 1), lambda d, it: (0, 0),
                             pipeline_mode=pl.Buffered(1)),   # constant index
            ],
            out_specs=(
                pl.BlockSpec((1, B, 128), lambda d, it: (d, 0, 0)),
                pl.BlockSpec((1, S, 1), lambda d, it: (d, 0, 0)),
                pl.BlockSpec((1, S, 1), lambda d, it: (d, 0, 0)),
            ),
        ),
        out_shape=(
            jax.ShapeDtypeStruct((n_dtiles, B, 128), jnp.float32),
            jax.ShapeDtypeStruct((n_dtiles, S, 1), jnp.float32),
            jax.ShapeDtypeStruct((n_dtiles, S, 1), jnp.float32),
        ),
        compiler_params=pltpu.CompilerParams(
            dimension_semantics=("parallel",),
            vmem_limit_bytes=vmem_limit),
        cost_estimate=pl.CostEstimate(
            flops=int((6 * two_b + 6 * S) * D),
            transcendentals=int((two_b + S) * D),
            bytes_accessed=int((two_b + S + 1) * D * itemsize)),
    )(inv_temp, teacher_output, student_output, center, t_lse)

    # ---------------- tiny XLA finalize ---------------- #
    s_m = jnp.max(s_max_p, axis=0)                                   # (S, 1)
    s_z = jnp.sum(s_sum_p * jnp.exp(s_max_p - s_m), axis=0)
    s_lse = s_m + jnp.log(s_z)                                       # (S, 1)
    n_global = min(ncrops, 2) * B
    lse_corr = jnp.sum(s_lse[:n_global]) + 2.0 * jnp.sum(s_lse[n_global:])
    loss = (lse_corr - jnp.sum(dot_p)) * (1.0 / (B * n_terms))
    return loss, new_center


class DINOLossPallas:
    """JAX/Pallas port of the PyTorch DINOLoss module (forward + center EMA)."""

    def __init__(self, out_dim, ncrops, warmup_teacher_temp, teacher_temp,
                 warmup_teacher_temp_epochs, nepochs,
                 student_temp=0.1, center_momentum=0.9, feature_tile=None):
        self.out_dim = out_dim
        self.ncrops = ncrops
        self.student_temp = float(student_temp)
        self.center_momentum = float(center_momentum)
        self.feature_tile = feature_tile
        self.center = jnp.zeros((1, out_dim), dtype=jnp.float32)
        self.teacher_temp_schedule = np.concatenate((
            np.linspace(warmup_teacher_temp, teacher_temp,
                        warmup_teacher_temp_epochs),
            np.ones(nepochs - warmup_teacher_temp_epochs) * teacher_temp,
        ))

    def __call__(self, student_output, teacher_output, epoch):
        ncrops, D = self.ncrops, self.out_dim
        n_s, d_s = student_output.shape
        n_t, d_t = teacher_output.shape
        assert d_s == D and d_t == D
        assert n_s % ncrops == 0
        B = n_s // ncrops
        assert n_t == 2 * B
        assert B % 8 == 0, "batch size per crop must be a multiple of 8"
        assert D % 128 == 0, "out_dim must be a multiple of 128"

        temp = jnp.float32(self.teacher_temp_schedule[int(epoch)])
        loss, new_center = _dino_loss_forward(
            student_output, teacher_output, self.center, temp,
            ncrops=ncrops, student_temp=self.student_temp,
            center_momentum=self.center_momentum,
            feature_tile=self.feature_tile)
        self.center = new_center      # stateful buffer update, as in PyTorch
        return loss


def _reference_dino_loss(student_output, teacher_output, center, epoch,
                         ncrops, student_temp, teacher_temp_schedule,
                         center_momentum):
    """Pure-JAX reference for correctness checking."""
    student_out = student_output / student_temp
    student_chunks = jnp.split(student_out, ncrops, axis=0)
    temp = teacher_temp_schedule[int(epoch)]
    teacher_sm = jax.nn.softmax((teacher_output - center) / temp, axis=-1)
    teacher_chunks = jnp.split(teacher_sm, 2, axis=0)
    total, n_terms = 0.0, 0
    for iq, q in enumerate(teacher_chunks):
        for v in range(ncrops):
            if v == iq:
                continue
            loss = jnp.sum(-q * jax.nn.log_softmax(student_chunks[v], axis=-1),
                           axis=-1)
            total = total + jnp.mean(loss)
            n_terms += 1
    total = total / n_terms
    batch_center = (jnp.sum(teacher_output, axis=0, keepdims=True)
                    / teacher_output.shape[0])
    new_center = center * center_momentum + batch_center * (1 - center_momentum)
    return total, new_center


if __name__ == "__main__":
    out_dim, ncrops, B = 512, 4, 8
    nepochs, warmup_teacher_temp, teacher_temp, warmup_epochs = 10, 0.04, 0.07, 3

    key = jax.random.PRNGKey(0)
    k1, k2 = jax.random.split(key)
    student_output = jax.random.normal(k1, (ncrops * B, out_dim), jnp.float32)
    teacher_output = jax.random.normal(k2, (2 * B, out_dim), jnp.float32)

    # Force two feature tiles (TD=256) to exercise the streamed, tiled path.
    loss_mod = DINOLossPallas(out_dim, ncrops, warmup_teacher_temp, teacher_temp,
                              warmup_epochs, nepochs, feature_tile=256)

    # Two epochs with different teacher temperatures reuse the same compilation
    # (teacher_temp is a traced SMEM scalar).
    for epoch in (1, 2):
        center_before = loss_mod.center
        loss = loss_mod(student_output, teacher_output, epoch)
        jax.block_until_ready(loss)
        jax.block_until_ready(loss_mod.center)

        ref_loss, ref_center = _reference_dino_loss(
            student_output, teacher_output, center_before, epoch, ncrops,
            loss_mod.student_temp, loss_mod.teacher_temp_schedule,
            loss_mod.center_momentum)
        np.testing.assert_allclose(np.asarray(loss), np.asarray(ref_loss),
                                   rtol=2e-4, atol=2e-4)
        np.testing.assert_allclose(np.asarray(loss_mod.center),
                                   np.asarray(ref_center), rtol=1e-5, atol=1e-5)

    # bf16 activations (bandwidth-optimal on v5e/v6e); math stays f32 in-kernel.
    loss_mod16 = DINOLossPallas(out_dim, ncrops, warmup_teacher_temp,
                                teacher_temp, warmup_epochs, nepochs)
    s16 = student_output.astype(jnp.bfloat16)
    t16 = teacher_output.astype(jnp.bfloat16)
    loss16 = loss_mod16(s16, t16, 0)
    jax.block_until_ready(loss16)
    jax.block_until_ready(loss_mod16.center)
    ref_loss16, ref_center16 = _reference_dino_loss(
        s16.astype(jnp.float32), t16.astype(jnp.float32),
        jnp.zeros((1, out_dim), jnp.float32), 0, ncrops,
        loss_mod16.student_temp, loss_mod16.teacher_temp_schedule,
        loss_mod16.center_momentum)
    np.testing.assert_allclose(np.asarray(loss16), np.asarray(ref_loss16),
                               rtol=1e-3, atol=1e-3)
    np.testing.assert_allclose(np.asarray(loss_mod16.center),
                               np.asarray(ref_center16), rtol=1e-4, atol=1e-4)

    print("KERNEL_OK")
</pallas_src>

<mosaic_0001>
module attributes {stable_mosaic.version = 11 : i64} {
  func.func @_teacher_stats_kernel(%arg0: i32, %arg1: memref<1xf32, #tpu.memory_space<smem>>, %arg2: memref<16x256xf32, #tpu.memory_space<vmem>>, %arg3: memref<1x256xf32, #tpu.memory_space<vmem>>, %arg4: memref<1x16x1xf32, #tpu.memory_space<vmem>>, %arg5: memref<1x16x1xf32, #tpu.memory_space<vmem>>, %arg6: memref<1x256xf32, #tpu.memory_space<vmem>>) attributes {dimension_semantics = [#tpu.dimension_semantics<parallel>], iteration_bounds = array<i64: 2>, scalar_prefetch = 1 : i64, scratch_operands = 0 : i64, tpu.core_type = #tpu.core_type<tc>, window_params = [{transform_indices = @transform_0, window_bounds = array<i64: 16, 256>}, {transform_indices = @transform_1, window_bounds = array<i64: 1, 256>}, {transform_indices = @transform_2, window_bounds = array<i64: 1, 16, 1>}, {transform_indices = @transform_3, window_bounds = array<i64: 1, 16, 1>}, {transform_indices = @transform_4, window_bounds = array<i64: 1, 256>}]} {
    %c0 = arith.constant 0 : index
    %c0_0 = arith.constant 0 : index
    %0 = vector.load %arg3[%c0, %c0_0] : memref<1x256xf32, #tpu.memory_space<vmem>>, vector<1x256xf32>
    %c0_1 = arith.constant 0 : index
    %c0_2 = arith.constant 0 : index
    %1 = vector.load %arg2[%c0_1, %c0_2] : memref<16x256xf32, #tpu.memory_space<vmem>>, vector<16x256xf32>
    %2 = vector.broadcast %0 : vector<1x256xf32> to vector<16x256xf32>
    %3 = arith.subf %1, %2 : vector<16x256xf32>
    %c0_3 = arith.constant 0 : index
    %4 = memref.load %arg1[%c0_3] : memref<1xf32, #tpu.memory_space<smem>>
    %5 = vector.broadcast %4 : f32 to vector<16x256xf32>
    %6 = arith.mulf %3, %5 : vector<16x256xf32>
    %cst = arith.constant dense<0.000000e+00> : vector<256xf32>
    %7 = vector.multi_reduction <add>, %1, %cst [0] : vector<16x256xf32> to vector<256xf32>
    %8 = vector.shape_cast %7 : vector<256xf32> to vector<1x256xf32>
    %cst_4 = arith.constant 6.250000e-02 : f32
    %9 = vector.broadcast %cst_4 : f32 to vector<1x256xf32>
    %10 = arith.mulf %8, %9 : vector<1x256xf32>
    %cst_5 = arith.constant 0.899999976 : f32
    %11 = vector.broadcast %cst_5 : f32 to vector<1x256xf32>
    %12 = arith.mulf %0, %11 : vector<1x256xf32>
    %cst_6 = arith.constant 1.000000e-01 : f32
    %13 = vector.broadcast %cst_6 : f32 to vector<1x256xf32>
    %14 = arith.mulf %10, %13 : vector<1x256xf32>
    %15 = arith.addf %12, %14 : vector<1x256xf32>
    %c0_7 = arith.constant 0 : index
    %c0_8 = arith.constant 0 : index
    %16 = vector.load %arg6[%c0_7, %c0_8] : memref<1x256xf32, #tpu.memory_space<vmem>>, vector<1x256xf32>
    tpu.vector_store %arg6[%c0_7, %c0_8], %15 {strides = array<i32>} : memref<1x256xf32, #tpu.memory_space<vmem>>, vector<1x256xf32>,
    %cst_9 = arith.constant dense<0xFF800000> : vector<16xf32>
    %17 = vector.multi_reduction <maximumf>, %6, %cst_9 [1] : vector<16x256xf32> to vector<16xf32>
    %18 = vector.shape_cast %17 : vector<16xf32> to vector<16x1xf32>
    %19 = vector.broadcast %18 : vector<16x1xf32> to vector<16x256xf32>
    %20 = arith.subf %6, %19 : vector<16x256xf32>
    %21 = math.exp %20 : vector<16x256xf32>
    %cst_10 = arith.constant dense<0.000000e+00> : vector<16xf32>
    %22 = vector.multi_reduction <add>, %21, %cst_10 [1] : vector<16x256xf32> to vector<16xf32>
    %23 = vector.shape_cast %22 : vector<16xf32> to vector<16x1xf32>
    %c0_11 = arith.constant 0 : index
    %c0_12 = arith.constant 0 : index
    %c0_13 = arith.constant 0 : index
    %24 = vector.load %arg4[%c0_11, %c0_12, %c0_13] : memref<1x16x1xf32, #tpu.memory_space<vmem>>, vector<1x16x1xf32>
    %25 = vector.shape_cast %24 : vector<1x16x1xf32> to vector<16x1xf32>
    %26 = vector.shape_cast %18 : vector<16x1xf32> to vector<1x16x1xf32>
    tpu.vector_store %arg4[%c0_11, %c0_12, %c0_13], %26 {strides = array<i32>} : memref<1x16x1xf32, #tpu.memory_space<vmem>>, vector<1x16x1xf32>,
    %c0_14 = arith.constant 0 : index
    %c0_15 = arith.constant 0 : index
    %c0_16 = arith.constant 0 : index
    %27 = vector.load %arg5[%c0_14, %c0_15, %c0_16] : memref<1x16x1xf32, #tpu.memory_space<vmem>>, vector<1x16x1xf32>
    %28 = vector.shape_cast %27 : vector<1x16x1xf32> to vector<16x1xf32>
    %29 = vector.shape_cast %23 : vector<16x1xf32> to vector<1x16x1xf32>
    tpu.vector_store %arg5[%c0_14, %c0_15, %c0_16], %29 {strides = array<i32>} : memref<1x16x1xf32, #tpu.memory_space<vmem>>, vector<1x16x1xf32>,
    return
  }
  func.func @transform_0(%arg0: i32, %arg1: memref<1xf32, #tpu.memory_space<smem>>) -> (i32, i32) {
    %c0_i32 = arith.constant 0 : i32
    %c0_i32_0 = arith.constant 0 : i32
    return %c0_i32, %arg0 : i32, i32
  }
  func.func @transform_1(%arg0: i32, %arg1: memref<1xf32, #tpu.memory_space<smem>>) -> (i32, i32) {
    %c0_i32 = arith.constant 0 : i32
    %c0_i32_0 = arith.constant 0 : i32
    return %c0_i32, %arg0 : i32, i32
  }
  func.func @transform_2(%arg0: i32, %arg1: memref<1xf32, #tpu.memory_space<smem>>) -> (i32, i32, i32) {
    %c0_i32 = arith.constant 0 : i32
    %c0_i32_0 = arith.constant 0 : i32
    %c0_i32_1 = arith.constant 0 : i32
    return %arg0, %c0_i32, %c0_i32_0 : i32, i32, i32
  }
  func.func @transform_3(%arg0: i32, %arg1: memref<1xf32, #tpu.memory_space<smem>>) -> (i32, i32, i32) {
    %c0_i32 = arith.constant 0 : i32
    %c0_i32_0 = arith.constant 0 : i32
    %c0_i32_1 = arith.constant 0 : i32
    return %arg0, %c0_i32, %c0_i32_0 : i32, i32, i32
  }
  func.func @transform_4(%arg0: i32, %arg1: memref<1xf32, #tpu.memory_space<smem>>) -> (i32, i32) {
    %c0_i32 = arith.constant 0 : i32
    %c0_i32_0 = arith.constant 0 : i32
    return %c0_i32, %arg0 : i32, i32
  }
}

module attributes {stable_mosaic.version = 11 : i64} {
  func.func @_cross_term_kernel(%arg0: i32, %arg1: memref<1xf32, #tpu.memory_space<smem>>, %arg2: memref<16x256xf32, #tpu.memory_space<vmem>>, %arg3: memref<32x256xf32, #tpu.memory_space<vmem>>, %arg4: memref<1x256xf32, #tpu.memory_space<vmem>>, %arg5: memref<16x1xf32, #tpu.memory_space<vmem>>, %arg6: memref<1x8x128xf32, #tpu.memory_space<vmem>>, %arg7: memref<1x32x1xf32, #tpu.memory_space<vmem>>, %arg8: memref<1x32x1xf32, #tpu.memory_space<vmem>>) attributes {dimension_semantics = [#tpu.dimension_semantics<parallel>], iteration_bounds = array<i64: 2>, scalar_prefetch = 1 : i64, scratch_operands = 0 : i64, tpu.core_type = #tpu.core_type<tc>, window_params = [{transform_indices = @transform_0, window_bounds = array<i64: 16, 256>}, {transform_indices = @transform_1, window_bounds = array<i64: 32, 256>}, {transform_indices = @transform_2, window_bounds = array<i64: 1, 256>}, {pipeline_mode = #tpu.pipeline_mode<synchronous>, transform_indices = @transform_3, window_bounds = array<i64: 16, 1>}, {transform_indices = @transform_4, window_bounds = array<i64: 1, 8, 128>}, {transform_indices = @transform_5, window_bounds = array<i64: 1, 32, 1>}, {transform_indices = @transform_6, window_bounds = array<i64: 1, 32, 1>}]} {
    %c0 = arith.constant 0 : index
    %c0_0 = arith.constant 0 : index
    %0 = vector.load %arg2[%c0, %c0_0] : memref<16x256xf32, #tpu.memory_space<vmem>>, vector<16x256xf32>
    %c0_1 = arith.constant 0 : index
    %c0_2 = arith.constant 0 : index
    %1 = vector.load %arg4[%c0_1, %c0_2] : memref<1x256xf32, #tpu.memory_space<vmem>>, vector<1x256xf32>
    %2 = vector.broadcast %1 : vector<1x256xf32> to vector<16x256xf32>
    %3 = arith.subf %0, %2 : vector<16x256xf32>
    %c0_3 = arith.constant 0 : index
    %4 = memref.load %arg1[%c0_3] : memref<1xf32, #tpu.memory_space<smem>>
    %5 = vector.broadcast %4 : f32 to vector<16x256xf32>
    %6 = arith.mulf %3, %5 : vector<16x256xf32>
    %c0_4 = arith.constant 0 : index
    %c0_5 = arith.constant 0 : index
    %7 = vector.load %arg5[%c0_4, %c0_5] : memref<16x1xf32, #tpu.memory_space<vmem>>, vector<16x1xf32>
    %8 = vector.broadcast %7 : vector<16x1xf32> to vector<16x256xf32>
    %9 = arith.subf %6, %8 : vector<16x256xf32>
    %10 = math.exp %9 : vector<16x256xf32>
    %c0_6 = arith.constant 0 : index
    %c0_7 = arith.constant 0 : index
    %11 = vector.load %arg3[%c0_6, %c0_7] : memref<32x256xf32, #tpu.memory_space<vmem>>, vector<32x256xf32>
    %cst = arith.constant 1.000000e+01 : f32
    %12 = vector.broadcast %cst : f32 to vector<32x256xf32>
    %13 = arith.mulf %11, %12 : vector<32x256xf32>
    %cst_8 = arith.constant dense<0xFF800000> : vector<32xf32>
    %14 = vector.multi_reduction <maximumf>, %13, %cst_8 [1] : vector<32x256xf32> to vector<32xf32>
    %15 = vector.shape_cast %14 : vector<32xf32> to vector<32x1xf32>
    %16 = vector.broadcast %15 : vector<32x1xf32> to vector<32x256xf32>
    %17 = arith.subf %13, %16 : vector<32x256xf32>
    %18 = math.exp %17 : vector<32x256xf32>
    %cst_9 = arith.constant dense<0.000000e+00> : vector<32xf32>
    %19 = vector.multi_reduction <add>, %18, %cst_9 [1] : vector<32x256xf32> to vector<32xf32>
    %20 = vector.shape_cast %19 : vector<32xf32> to vector<32x1xf32>
    %c0_10 = arith.constant 0 : index
    %c0_11 = arith.constant 0 : index
    %c0_12 = arith.constant 0 : index
    %21 = vector.load %arg7[%c0_10, %c0_11, %c0_12] : memref<1x32x1xf32, #tpu.memory_space<vmem>>, vector<1x32x1xf32>
    %22 = vector.shape_cast %21 : vector<1x32x1xf32> to vector<32x1xf32>
    %23 = vector.shape_cast %15 : vector<32x1xf32> to vector<1x32x1xf32>
    tpu.vector_store %arg7[%c0_10, %c0_11, %c0_12], %23 {strides = array<i32>} : memref<1x32x1xf32, #tpu.memory_space<vmem>>, vector<1x32x1xf32>,
    %c0_13 = arith.constant 0 : index
    %c0_14 = arith.constant 0 : index
    %c0_15 = arith.constant 0 : index
    %24 = vector.load %arg8[%c0_13, %c0_14, %c0_15] : memref<1x32x1xf32, #tpu.memory_space<vmem>>, vector<1x32x1xf32>
    %25 = vector.shape_cast %24 : vector<1x32x1xf32> to vector<32x1xf32>
    %26 = vector.shape_cast %20 : vector<32x1xf32> to vector<1x32x1xf32>
    tpu.vector_store %arg8[%c0_13, %c0_14, %c0_15], %26 {strides = array<i32>} : memref<1x32x1xf32, #tpu.memory_space<vmem>>, vector<1x32x1xf32>,
    %27 = vector.extract_strided_slice %10 {offsets = [0, 0], sizes = [8, 256], strides = [1, 1]} : vector<16x256xf32> to vector<8x256xf32>
    %28 = vector.extract_strided_slice %10 {offsets = [8, 0], sizes = [8, 256], strides = [1, 1]} : vector<16x256xf32> to vector<8x256xf32>
    %29 = vector.extract_strided_slice %13 {offsets = [0, 0], sizes = [8, 256], strides = [1, 1]} : vector<32x256xf32> to vector<8x256xf32>
    %30 = arith.mulf %28, %29 : vector<8x256xf32>
    %31 = vector.extract_strided_slice %13 {offsets = [8, 0], sizes = [8, 256], strides = [1, 1]} : vector<32x256xf32> to vector<8x256xf32>
    %32 = arith.mulf %27, %31 : vector<8x256xf32>
    %33 = arith.addf %30, %32 : vector<8x256xf32>
    %34 = vector.extract_strided_slice %13 {offsets = [16, 0], sizes = [8, 256], strides = [1, 1]} : vector<32x256xf32> to vector<8x256xf32>
    %35 = vector.extract_strided_slice %13 {offsets = [24, 0], sizes = [8, 256], strides = [1, 1]} : vector<32x256xf32> to vector<8x256xf32>
    %36 = arith.addf %34, %35 : vector<8x256xf32>
    %37 = arith.addf %27, %28 : vector<8x256xf32>
    %38 = arith.mulf %37, %36 : vector<8x256xf32>
    %39 = arith.addf %33, %38 : vector<8x256xf32>
    %40 = vector.extract_strided_slice %39 {offsets = [0, 0], sizes = [8, 128], strides = [1, 1]} : vector<8x256xf32> to vector<8x128xf32>
    %41 = vector.extract_strided_slice %39 {offsets = [0, 128], sizes = [8, 128], strides = [1, 1]} : vector<8x256xf32> to vector<8x128xf32>
    %42 = arith.addf %40, %41 : vector<8x128xf32>
    %c0_16 = arith.constant 0 : index
    %c0_17 = arith.constant 0 : index
    %c0_18 = arith.constant 0 : index
    %43 = vector.load %arg6[%c0_16, %c0_17, %c0_18] : memref<1x8x128xf32, #tpu.memory_space<vmem>>, vector<1x8x128xf32>
    %44 = vector.shape_cast %43 : vector<1x8x128xf32> to vector<8x128xf32>
    %45 = vector.shape_cast %42 : vector<8x128xf32> to vector<1x8x128xf32>
    tpu.vector_store %arg6[%c0_16, %c0_17, %c0_18], %45 {strides = array<i32>} : memref<1x8x128xf32, #tpu.memory_space<vmem>>, vector<1x8x128xf32>,
    return
  }
  func.func @transform_0(%arg0: i32, %arg1: memref<1xf32, #tpu.memory_space<smem>>) -> (i32, i32) {
    %c0_i32 = arith.constant 0 : i32
    %c0_i32_0 = arith.constant 0 : i32
    return %c0_i32, %arg0 : i32, i32
  }
  func.func @transform_1(%arg0: i32, %arg1: memref<1xf32, #tpu.memory_space<smem>>) -> (i32, i32) {
    %c0_i32 = arith.constant 0 : i32
    %c0_i32_0 = arith.constant 0 : i32
    return %c0_i32, %arg0 : i32, i32
  }
  func.func @transform_2(%arg0: i32, %arg1: memref<1xf32, #tpu.memory_space<smem>>) -> (i32, i32) {
    %c0_i32 = arith.constant 0 : i32
    %c0_i32_0 = arith.constant 0 : i32
    return %c0_i32, %arg0 : i32, i32
  }
  func.func @transform_3(%arg0: i32, %arg1: memref<1xf32, #tpu.memory_space<smem>>) -> (i32, i32) {
    %c0_i32 = arith.constant 0 : i32
    %c0_i32_0 = arith.constant 0 : i32
    %c0_i32_1 = arith.constant 0 : i32
    return %c0_i32, %c0_i32_0 : i32, i32
  }
  func.func @transform_4(%arg0: i32, %arg1: memref<1xf32, #tpu.memory_space<smem>>) -> (i32, i32, i32) {
    %c0_i32 = arith.constant 0 : i32
    %c0_i32_0 = arith.constant 0 : i32
    %c0_i32_1 = arith.constant 0 : i32
    return %arg0, %c0_i32, %c0_i32_0 : i32, i32, i32
  }
  func.func @transform_5(%arg0: i32, %arg1: memref<1xf32, #tpu.memory_space<smem>>) -> (i32, i32, i32) {
    %c0_i32 = arith.constant 0 : i32
    %c0_i32_0 = arith.constant 0 : i32
    %c0_i32_1 = arith.constant 0 : i32
    return %arg0, %c0_i32, %c0_i32_0 : i32, i32, i32
  }
  func.func @transform_6(%arg0: i32, %arg1: memref<1xf32, #tpu.memory_space<smem>>) -> (i32, i32, i32) {
    %c0_i32 = arith.constant 0 : i32
    %c0_i32_0 = arith.constant 0 : i32
    %c0_i32_1 = arith.constant 0 : i32
    return %arg0, %c0_i32, %c0_i32_0 : i32, i32, i32
  }
}

</mosaic_0001>

<llo_original>
// kernel: _dino_loss_forward.3
$region0: #{_dino_loss_forward.3}
  #allocation0 [shape = 'u32[]', space=smem, size = 0x4, offset = 0x4, fixed_abs, tag = 'smem constant byte address 0x4 - core index']
  #allocation1 [shape = 'u32[72,128]{1,0:T(1,128)}', space=vmem, size = 0x9000, scoped, tag = 'internal scratch']
  #allocation2 [shape = 's32[1]{0}', space=sflag, size = 0x4, scoped, tag = 'scoped memory for _dino_loss_forward.3']
  #allocation3 [shape = 'f32[1]{0:T(128)S(6)}', space=smem, size = 0x200, scoped, tag = 'prefetched SMEM operand 0']
  %s0 = inlined_call_operand.<no memory space> [shape: f32[1], index: 0, kind: input, shape index: {}]
  %s1 = inlined_call_operand.vmem [shape: f32[16,512], index: 1, kind: input, shape index: {}]
  %s2 = inlined_call_operand.vmem [shape: f32[32,512], index: 2, kind: input, shape index: {}]
  %s3 = inlined_call_operand.vmem [shape: f32[1,512], index: 3, kind: input, shape index: {}]
  %s4 = inlined_call_operand.vmem [shape: f32[16,1], index: 4, kind: input, shape index: {}]
  %s5 = inlined_call_operand.vmem [shape: f32[2,8,128], index: 5, kind: output, shape index: {0}]
  %s6 = inlined_call_operand.vmem [shape: f32[2,32,1], index: 6, kind: output, shape index: {1}]
  %s7 = inlined_call_operand.vmem [shape: f32[2,32,1], index: 7, kind: output, shape index: {2}]
  %8 = xla_tuple %s5, %s6, %s7
  %s9 = sld [smem:[#allocation0]]
  $region111: #{_dino_loss_forward.3} parent=0
    _
  %s11 = ssub.s32 1, %s9
  %s12 = scalar_select 0, %s11, %s9
  %13 = sst [smem:[#allocation3]] %s0
  $region1: #{_dino_loss_forward.3} parent=0
    #allocation4 [shape = 'u8[32768]{0}', space=vmem, size = 0x8000, scoped, tag = 'input window, operand 1']
    #allocation5 [shape = 'u8[65536]{0}', space=vmem, size = 0x10000, scoped, tag = 'input window, operand 2']
    loop: start=0, step=1, limit=4
    $region2: #{_dino_loss_forward.3} parent=1 // loop_pre_header
      _
    $region3: #{_dino_loss_forward.3} parent=1 // loop_header
      %s15 = sphi 0, %s19
      %p16 = scmp.ge.s32.totalorder %s15, 4
      %s25 = sphi 0, %s27
      %s28 = sphi 0, %s25
      %s29 = sphi 0, %s28
      %s45 = sphi 0, %s29
      %s51 = sphi 0, %s53
      %s54 = sphi 0, %s51
      %s55 = sphi 0, %s54
      %s71 = sphi 0, %s55
      %s77 = sphi 0, %s79
      %s80 = sphi 0, %s77
      %s81 = sphi 0, %s80
      %s97 = sphi 0, %s81
      %s101 = sphi 0, %s101
      %s103 = sphi 0, %s101
      %s104 = sphi 0, %s103
      %s118 = sphi 0, %s104
      %s124 = sphi 0, %s126
      %s127 = sphi 0, %s124
      %s128 = sphi 0, %s127
      %s144 = sphi 0, %s128
      %s150 = sphi 0, %s152
      %s153 = sphi 0, %s150
      %s154 = sphi 0, %s153
      %s170 = sphi 0, %s154
      %s176 = sphi 0, %s178
      %s179 = sphi 0, %s176
      %s180 = sphi 0, %s179
      %s196 = sphi 0, %s180
    $region4: #{_dino_loss_forward.3} parent=1 // loop_header_branch
      %18 = sbr.rel (%p16) target = $region8
    $region5: #{_dino_loss_forward.3} parent=1 // loop_body
      %s20 = ssub.s32 %s15, 1
      %s21 = ssub.s32 %s15, 2
      %s22 = sadd.s32 %s15, 1
      %s23 = ssub.s32 %s15, %s22
      %p24 = scmp.eq.s32.totalorder %s23, 0
      %s26 = sadd.s32 %s25, 1
      %s27 = scalar_select %p24, %s25, %s26
      %p30 = pneg %p24
      %p31 = scmp.eq.s32.totalorder %s15, 1
      %p32 = por %p30, %p31
      %p33 = scmp.ne.s32.totalorder %s25, %s28
      %p34 = scmp.eq.s32.totalorder %s15, 0
      %p35 = por %p33, %p34
      %p36 = scmp.ne.s32.totalorder %s25, %s28
      %p37 = scmp.eq.s32.totalorder %s20, 1
      %p38 = por %p36, %p37
      %p39 = scmp.ne.s32.totalorder %s28, %s29
      %p40 = scmp.eq.s32.totalorder %s20, 0
      %p41 = por %p39, %p40
      %p42 = scmp.ne.s32.totalorder %s28, %s29
      %p43 = scmp.eq.s32.totalorder %s21, 1
      %p44 = por %p42, %p43
      %p46 = scmp.ne.s32.totalorder %s29, %s45
      %p47 = scmp.eq.s32.totalorder %s21, 0
      %p48 = por %p46, %p47
      %s49 = ssub.s32 %s15, %s22
      %p50 = scmp.eq.s32.totalorder %s49, 0
      %s52 = sadd.s32 %s51, 1
      %s53 = scalar_select %p50, %s51, %s52
      %p56 = pneg %p50
      %p57 = scmp.eq.s32.totalorder %s15, 1
      %p58 = por %p56, %p57
      %p59 = scmp.ne.s32.totalorder %s51, %s54
      %p60 = scmp.eq.s32.totalorder %s15, 0
      %p61 = por %p59, %p60
      %p62 = scmp.ne.s32.totalorder %s51, %s54
      %p63 = scmp.eq.s32.totalorder %s20, 1
      %p64 = por %p62, %p63
      %p65 = scmp.ne.s32.totalorder %s54, %s55
      %p66 = scmp.eq.s32.totalorder %s20, 0
      %p67 = por %p65, %p66
      %p68 = scmp.ne.s32.totalorder %s54, %s55
      %p69 = scmp.eq.s32.totalorder %s21, 1
      %p70 = por %p68, %p69
      %p72 = scmp.ne.s32.totalorder %s55, %s71
      %p73 = scmp.eq.s32.totalorder %s21, 0
      %p74 = por %p72, %p73
      %s75 = ssub.s32 %s15, %s22
      %p76 = scmp.eq.s32.totalorder %s75, 0
      %s78 = sadd.s32 %s77, 1
      %s79 = scalar_select %p76, %s77, %s78
      %p82 = pneg %p76
      %p83 = scmp.eq.s32.totalorder %s15, 1
      %p84 = por %p82, %p83
      %p85 = scmp.ne.s32.totalorder %s77, %s80
      %p86 = scmp.eq.s32.totalorder %s15, 0
      %p87 = por %p85, %p86
      %p88 = scmp.ne.s32.totalorder %s77, %s80
      %p89 = scmp.eq.s32.totalorder %s20, 1
      %p90 = por %p88, %p89
      %p91 = scmp.ne.s32.totalorder %s80, %s81
      %p92 = scmp.eq.s32.totalorder %s20, 0
      %p93 = por %p91, %p92
      %p94 = scmp.ne.s32.totalorder %s80, %s81
      %p95 = scmp.eq.s32.totalorder %s21, 1
      %p96 = por %p94, %p95
      %p98 = scmp.ne.s32.totalorder %s81, %s97
      %p99 = scmp.eq.s32.totalorder %s21, 0
      %p100 = por %p98, %p99
      %s102 = sadd.s32 %s101, 1
      %p105 = scmp.eq.s32.totalorder %s15, 1
      %p106 = scmp.ne.s32.totalorder %s101, %s103
      %p107 = scmp.eq.s32.totalorder %s15, 0
      %p108 = por %p106, %p107
      %p109 = scmp.ne.s32.totalorder %s101, %s103
      %p110 = scmp.eq.s32.totalorder %s20, 1
      %p111 = por %p109, %p110
      %p112 = scmp.ne.s32.totalorder %s103, %s104
      %p113 = scmp.eq.s32.totalorder %s20, 0
      %p114 = por %p112, %p113
      %p115 = scmp.ne.s32.totalorder %s103, %s104
      %p116 = scmp.eq.s32.totalorder %s21, 1
      %p117 = por %p115, %p116
      %p119 = scmp.ne.s32.totalorder %s104, %s118
      %p120 = scmp.eq.s32.totalorder %s21, 0
      %p121 = por %p119, %p120
      %s122 = ssub.s32 %s15, %s22
      %p123 = scmp.eq.s32.totalorder %s122, 0
      %s125 = sadd.s32 %s124, 1
      %s126 = scalar_select %p123, %s124, %s125
      %p129 = pneg %p123
      %p130 = scmp.eq.s32.totalorder %s15, 1
      %p131 = por %p129, %p130
      %p132 = scmp.ne.s32.totalorder %s124, %s127
      %p133 = scmp.eq.s32.totalorder %s15, 0
      %p134 = por %p132, %p133
      %p135 = scmp.ne.s32.totalorder %s124, %s127
      %p136 = scmp.eq.s32.totalorder %s20, 1
      %p137 = por %p135, %p136
      %p138 = scmp.ne.s32.totalorder %s127, %s128
      %p139 = scmp.eq.s32.totalorder %s20, 0
      %p140 = por %p138, %p139
      %p141 = scmp.ne.s32.totalorder %s127, %s128
      %p142 = scmp.eq.s32.totalorder %s21, 1
      %p143 = por %p141, %p142
      %p145 = scmp.ne.s32.totalorder %s128, %s144
      %p146 = scmp.eq.s32.totalorder %s21, 0
      %p147 = por %p145, %p146
      %s148 = ssub.s32 %s15, %s22
      %p149 = scmp.eq.s32.totalorder %s148, 0
      %s151 = sadd.s32 %s150, 1
      %s152 = scalar_select %p149, %s150, %s151
      %p155 = pneg %p149
      %p156 = scmp.eq.s32.totalorder %s15, 1
      %p157 = por %p155, %p156
      %p158 = scmp.ne.s32.totalorder %s150, %s153
      %p159 = scmp.eq.s32.totalorder %s15, 0
      %p160 = por %p158, %p159
      %p161 = scmp.ne.s32.totalorder %s150, %s153
      %p162 = scmp.eq.s32.totalorder %s20, 1
      %p163 = por %p161, %p162
      %p164 = scmp.ne.s32.totalorder %s153, %s154
      %p165 = scmp.eq.s32.totalorder %s20, 0
      %p166 = por %p164, %p165
      %p167 = scmp.ne.s32.totalorder %s153, %s154
      %p168 = scmp.eq.s32.totalorder %s21, 1
      %p169 = por %p167, %p168
      %p171 = scmp.ne.s32.totalorder %s154, %s170
      %p172 = scmp.eq.s32.totalorder %s21, 0
      %p173 = por %p171, %p172
      %s174 = ssub.s32 %s15, %s22
      %p175 = scmp.eq.s32.totalorder %s174, 0
      %s177 = sadd.s32 %s176, 1
      %s178 = scalar_select %p175, %s176, %s177
      %p181 = pneg %p175
      %p182 = scmp.eq.s32.totalorder %s15, 1
      %p183 = por %p181, %p182
      %p184 = scmp.ne.s32.totalorder %s176, %s179
      %p185 = scmp.eq.s32.totalorder %s15, 0
      %p186 = por %p184, %p185
      %p187 = scmp.ne.s32.totalorder %s176, %s179
      %p188 = scmp.eq.s32.totalorder %s20, 1
      %p189 = por %p187, %p188
      %p190 = scmp.ne.s32.totalorder %s179, %s180
      %p191 = scmp.eq.s32.totalorder %s20, 0
      %p192 = por %p190, %p191
      %p193 = scmp.ne.s32.totalorder %s179, %s180
      %p194 = scmp.eq.s32.totalorder %s21, 1
      %p195 = por %p193, %p194
      %p197 = scmp.ne.s32.totalorder %s180, %s196
      %p198 = scmp.eq.s32.totalorder %s21, 0
      %p199 = por %p197, %p198
      %p200 = scmp.le.s32.totalorder 1, %s15
      %p201 = scmp.lt.s32.totalorder %s15, 3
      %p202 = pnand %p200, %p201
      %p203 = pneg %p202
      // Predicated region
      $region9: #{_dino_loss_forward.3} parent=5 // pred_check
        _
      $region10: #{_dino_loss_forward.3} parent=5 // pred_check_branch
        %205 = sbr.rel (%p202) target = $region12
      $region11: #{_dino_loss_forward.3} parent=5 // pred_region
        %s206 = ssub.s32 %s15, 1
        // Predicated region
        $region13: #{_dino_loss_forward.3} parent=11 // pred_check
          %p207 = pneg %p114
        $region14: #{_dino_loss_forward.3} parent=11 // pred_check_branch
          %209 = sbr.rel (%p207) target = $region16
        $region15: #{_dino_loss_forward.3} parent=11 // pred_region
          _
        $region16: #{_dino_loss_forward.3} parent=11 // pred_fallthru
          _
      $region12: #{_dino_loss_forward.3} parent=5 // pred_fallthru
        _
      %p210 = scmp.lt.s32.totalorder %s15, 2
      // Predicated region
      $region17: #{_dino_loss_forward.3} parent=5 // pred_check
        %p211 = pneg %p210
      $region18: #{_dino_loss_forward.3} parent=5 // pred_check_branch
        %213 = sbr.rel (%p211) target = $region20
      $region19: #{_dino_loss_forward.3} parent=5 // pred_region
        // Predicated region
        $region21: #{_dino_loss_forward.3} parent=19 // pred_check
          %p214 = pneg %p35
        $region22: #{_dino_loss_forward.3} parent=19 // pred_check_branch
          %216 = sbr.rel (%p214) target = $region24
        $region23: #{_dino_loss_forward.3} parent=19 // pred_region
          %s217 = sand.u32 %s25, 1
          %s218 = sand.u32 %s25, 1
          %s219 = smul.addr %s218, 32
          %s220 = scalar_lea.vmem [#allocation4], %s219
          %s221 = smul.u32 2, %s15
          %s222 = smul.addr %s221, 8
          %s223 = scalar_lea.vmem %s1, %s222
          // Predicated region
          $region25: #{_dino_loss_forward.3} parent=23 // pred_check
            _
          $region26: #{_dino_loss_forward.3} parent=23 // pred_check_branch
            %225 = sbr.rel (0) target = $region28
          $region27: #{_dino_loss_forward.3} parent=23 // pred_region
            // Predicated region
            $region29: #{_dino_loss_forward.3} parent=27 // pred_check
              _
            $region30: #{_dino_loss_forward.3} parent=27 // pred_check_branch
              %227 = sbr.rel (0) target = $region32
            $region31: #{_dino_loss_forward.3} parent=27 // pred_region
              loop: start=0, step=1, limit=1
              $region33: #{_dino_loss_forward.3} parent=31 // loop_pre_header
                _
              $region34: #{_dino_loss_forward.3} parent=31 // loop_header
                %s229 = sphi 0, %s233
                %p230 = scmp.ge.s32.totalorder %s229, 1
                %s234 = sphi %s223, %s223
                %s235 = sphi %s220, %s220
              $region35: #{_dino_loss_forward.3} parent=31 // loop_header_branch
                %232 = sbr.rel (%p230) target = $region39
              $region36: #{_dino_loss_forward.3} parent=31 // loop_body
                %v236 = vld [vmem:[%s234] sm:$0xff]
                %237 = vst [vmem:[%s235] sm:$0xff] %v236
                %v238 = vld [vmem:[%s234 + $0x8] sm:$0xff]
                %239 = vst [vmem:[%s235 + $0x8] sm:$0xff] %v238
                %v240 = vld [vmem:[%s234 + $0x20] sm:$0xff]
                %241 = vst [vmem:[%s235 + $0x10] sm:$0xff] %v240
                %v242 = vld [vmem:[%s234 + $0x28] sm:$0xff]
                %243 = vst [vmem:[%s235 + $0x18] sm:$0xff] %v242
              $region37: #{_dino_loss_forward.3} parent=31 // loop_footer
                %s233 = sadd.s32 1, %s229
              $region38: #{_dino_loss_forward.3} parent=31 // loop_footer_branch
                %228 = sbr.rel target = $region34
              $region39: #{_dino_loss_forward.3} parent=31 // loop_exit
                _
            $region32: #{_dino_loss_forward.3} parent=27 // pred_fallthru
              _
            // Predicated region
            $region40: #{_dino_loss_forward.3} parent=27 // pred_check
              _
            $region41: #{_dino_loss_forward.3} parent=27 // pred_check_branch
              %245 = sbr.rel target = $region43
            $region42: #{_dino_loss_forward.3} parent=27 // pred_region
              _
            $region43: #{_dino_loss_forward.3} parent=27 // pred_fallthru
              _
          $region28: #{_dino_loss_forward.3} parent=23 // pred_fallthru
            _
          %246 = vnop
        $region24: #{_dino_loss_forward.3} parent=19 // pred_fallthru
          _
        // Predicated region
        $region44: #{_dino_loss_forward.3} parent=19 // pred_check
          %p247 = pneg %p61
        $region45: #{_dino_loss_forward.3} parent=19 // pred_check_branch
          %249 = sbr.rel (%p247) target = $region47
        $region46: #{_dino_loss_forward.3} parent=19 // pred_region
          %s250 = sand.u32 %s51, 1
          %s251 = sand.u32 %s51, 1
          %s252 = smul.addr %s251, 64
          %s253 = scalar_lea.vmem [#allocation5], %s252
          %s254 = smul.u32 2, %s15
          %s255 = smul.addr %s254, 8
          %s256 = scalar_lea.vmem %s2, %s255
          // Predicated region
          $region48: #{_dino_loss_forward.3} parent=46 // pred_check
            _
          $region49: #{_dino_loss_forward.3} parent=46 // pred_check_branch
            %258 = sbr.rel (0) target = $region51
          $region50: #{_dino_loss_forward.3} parent=46 // pred_region
            // Predicated region
            $region52: #{_dino_loss_forward.3} parent=50 // pred_check
              _
            $region53: #{_dino_loss_forward.3} parent=50 // pred_check_branch
              %260 = sbr.rel (0) target = $region55
            $region54: #{_dino_loss_forward.3} parent=50 // pred_region
              loop: start=0, step=1, limit=1
              $region56: #{_dino_loss_forward.3} parent=54 // loop_pre_header
                _
              $region57: #{_dino_loss_forward.3} parent=54 // loop_header
                %s262 = sphi 0, %s266
                %p263 = scmp.ge.s32.totalorder %s262, 1
                %s267 = sphi %s256, %s256
                %s268 = sphi %s253, %s253
              $region58: #{_dino_loss_forward.3} parent=54 // loop_header_branch
                %265 = sbr.rel (%p263) target = $region62
              $region59: #{_dino_loss_forward.3} parent=54 // loop_body
                %v269 = vld [vmem:[%s267] sm:$0xff]
                %270 = vst [vmem:[%s268] sm:$0xff] %v269
                %v271 = vld [vmem:[%s267 + $0x8] sm:$0xff]
                %272 = vst [vmem:[%s268 + $0x8] sm:$0xff] %v271
                %v273 = vld [vmem:[%s267 + $0x20] sm:$0xff]
                %274 = vst [vmem:[%s268 + $0x10] sm:$0xff] %v273
                %v275 = vld [vmem:[%s267 + $0x28] sm:$0xff]
                %276 = vst [vmem:[%s268 + $0x18] sm:$0xff] %v275
                %v277 = vld [vmem:[%s267 + $0x40] sm:$0xff]
                %278 = vst [vmem:[%s268 + $0x20] sm:$0xff] %v277
                %v279 = vld [vmem:[%s267 + $0x48] sm:$0xff]
                %280 = vst [vmem:[%s268 + $0x28] sm:$0xff] %v279
                %v281 = vld [vmem:[%s267 + $0x60] sm:$0xff]
                %282 = vst [vmem:[%s268 + $0x30] sm:$0xff] %v281
                %v283 = vld [vmem:[%s267 + $0x68] sm:$0xff]
                %284 = vst [vmem:[%s268 + $0x38] sm:$0xff] %v283
              $region60: #{_dino_loss_forward.3} parent=54 // loop_footer
                %s266 = sadd.s32 1, %s262
              $region61: #{_dino_loss_forward.3} parent=54 // loop_footer_branch
                %261 = sbr.rel target = $region57
              $region62: #{_dino_loss_forward.3} parent=54 // loop_exit
                _
            $region55: #{_dino_loss_forward.3} parent=50 // pred_fallthru
              _
            // Predicated region
            $region63: #{_dino_loss_forward.3} parent=50 // pred_check
              _
            $region64: #{_dino_loss_forward.3} parent=50 // pred_check_branch
              %286 = sbr.rel target = $region66
            $region65: #{_dino_loss_forward.3} parent=50 // pred_region
              _
            $region66: #{_dino_loss_forward.3} parent=50 // pred_fallthru
              _
          $region51: #{_dino_loss_forward.3} parent=46 // pred_fallthru
            _
          %287 = vnop
        $region47: #{_dino_loss_forward.3} parent=19 // pred_fallthru
          _
        // Predicated region
        $region67: #{_dino_loss_forward.3} parent=19 // pred_check
          %p288 = pneg %p87
        $region68: #{_dino_loss_forward.3} parent=19 // pred_check_branch
          %290 = sbr.rel (%p288) target = $region70
        $region69: #{_dino_loss_forward.3} parent=19 // pred_region
          %s291 = smul.u32 2, %s15
          %p292 = scmp.lt.s32.totalorder %s291, 3
          %s293 = scalar_select %p292, %s291, 3
          %s294 = scalar_lea.vmem %s3, %s293
          %s295 = smul.u32 2, %s15
        $region70: #{_dino_loss_forward.3} parent=19 // pred_fallthru
          _
      $region20: #{_dino_loss_forward.3} parent=5 // pred_fallthru
        _
      %p296 = scmp.le.s32.totalorder 1, %s15
      %p297 = scmp.lt.s32.totalorder %s15, 3
      %p298 = pnand %p296, %p297
      %p299 = pneg %p298
      // Predicated region
      $region71: #{_dino_loss_forward.3} parent=5 // pred_check
        _
      $region72: #{_dino_loss_forward.3} parent=5 // pred_check_branch
        %301 = sbr.rel (%p298) target = $region74
      $region73: #{_dino_loss_forward.3} parent=5 // pred_region
        %s302 = ssub.s32 %s15, 1
        %s303 = sand.u32 %s28, 1
        %s304 = sand.u32 %s28, 1
        %s305 = smul.addr %s304, 32
        %s306 = scalar_lea.vmem [#allocation4], %s305
        // Predicated region
        $region75: #{_dino_loss_forward.3} parent=73 // pred_check
          %p307 = pneg %p41
        $region76: #{_dino_loss_forward.3} parent=73 // pred_check_branch
          %309 = sbr.rel (%p307) target = $region78
        $region77: #{_dino_loss_forward.3} parent=73 // pred_region
          _
        $region78: #{_dino_loss_forward.3} parent=73 // pred_fallthru
          _
        %s310 = sand.u32 %s54, 1
        %s311 = sand.u32 %s54, 1
        %s312 = smul.addr %s311, 64
        %s313 = scalar_lea.vmem [#allocation5], %s312
        // Predicated region
        $region79: #{_dino_loss_forward.3} parent=73 // pred_check
          %p314 = pneg %p67
        $region80: #{_dino_loss_forward.3} parent=73 // pred_check_branch
          %316 = sbr.rel (%p314) target = $region82
        $region81: #{_dino_loss_forward.3} parent=73 // pred_region
          _
        $region82: #{_dino_loss_forward.3} parent=73 // pred_fallthru
          _
        %s317 = sand.u32 %s28, 1
        %s318 = sand.u32 %s28, 1
        %s319 = smul.addr %s318, 32
        %s320 = scalar_lea.vmem [#allocation4], %s319
        %p321 = pneg %p41
        %p322 = pneg %p38
        %s323 = sand.u32 %s54, 1
        %s324 = sand.u32 %s54, 1
        %s325 = smul.addr %s324, 64
        %s326 = scalar_lea.vmem [#allocation5], %s325
        %p327 = pneg %p67
        %p328 = pneg %p64
        %s329 = smul.u32 2, %s20
        %p330 = scmp.lt.s32.totalorder %s329, 3
        %s331 = scalar_select %p330, %s329, 3
        %s332 = scalar_lea.vmem %s3, %s331
        %p333 = pneg %p93
        %p334 = pneg %p90
        %p335 = pneg %p114
        %p336 = pneg %p111
        %p337 = pneg %p140
        %p338 = pneg %p137
        %p339 = scmp.lt.s32.totalorder %s20, 1
        %s340 = scalar_select %p339, %s20, 1
        %s341 = smul.addr %s340, 8
        %s342 = scalar_lea.vmem %s5, %s341
        %p343 = pneg %p166
        %p344 = pneg %p163
        %p345 = scmp.lt.s32.totalorder %s20, 1
        %s346 = scalar_select %p345, %s20, 1
        %s347 = smul.addr %s346, 4
        %s348 = smul.addr %s347, 8
        %s349 = scalar_lea.vmem %s6, %s348
        %p350 = pneg %p192
        %p351 = pneg %p189
        %p352 = scmp.lt.s32.totalorder %s20, 1
        %s353 = scalar_select %p352, %s20, 1
        %s354 = smul.addr %s353, 4
        %s355 = smul.addr %s354, 8
        %s356 = scalar_lea.vmem %s7, %s355
        %s357 = smul.u32 2, %s20
        %s358 = smul.u32 2, %s20
        %s359 = smul.u32 2, %s20
        %p360 = scmp.lt.s32.totalorder %s359, 3
        %s361 = scalar_select %p360, %s359, 3
        %s362 = scalar_lea.vmem %s3, %s361
        %s363 = smul.u32 2, %s20
        %p364 = scmp.lt.s32.totalorder %s20, 1
        %s365 = scalar_select %p364, %s20, 1
        %s366 = smul.addr %s365, 8
        %s367 = scalar_lea.vmem %s5, %s366
        %p368 = scmp.lt.s32.totalorder %s20, 1
        %s369 = scalar_select %p368, %s20, 1
        %s370 = smul.addr %s369, 4
        %s371 = smul.addr %s370, 8
        %s372 = scalar_lea.vmem %s6, %s371
        %p373 = scmp.lt.s32.totalorder %s20, 1
        %s374 = scalar_select %p373, %s20, 1
        %s375 = smul.addr %s374, 4
        %s376 = smul.addr %s375, 8
        %s377 = scalar_lea.vmem %s7, %s376
        %v378 = vld [vmem:[%s306] sm:$0xff]
        %v379 = vld [vmem:[%s306 + $0x8] sm:$0xff]
        %v380 = vld [vmem:[%s306 + $0x10] sm:$0xff]
        %v381 = vld [vmem:[%s306 + $0x18] sm:$0xff]
        %v382 = vld [vmem:[%s362] sm:$0x3]
        %v384 = vperm.slane %v382, 0
        %v385 = vperm.slane %v382, 1
        %v388 = vsub.f32 %v378, %v384
        %v389 = vsub.f32 %v379, %v385
        %v390 = vsub.f32 %v380, %v384
        %v391 = vsub.f32 %v381, %v385
        %s392 = sld [smem:[#allocation3]]
        %v393 = vstv %s392
        %v394 = vmul.f32 %v388, %v393
        %v395 = vmul.f32 %v389, %v393
        %v396 = vmul.f32 %v390, %v393
        %v397 = vmul.f32 %v391, %v393
        %v398 = vld [vmem:[%s4] sm:$0xff]
        %v399 = vld [vmem:[%s4 + $0x8] sm:$0xff]
        %401 = vset.pattern.permute.xlu0 0
        %402 = vperm.xlu0 %401, %v398
        %v403 = vpop.permute.xlu0 %402
        %406 = vset.pattern.permute.xlu0 0
        %407 = vperm.xlu0 %406, %v399
        %v408 = vpop.permute.xlu0 %407
        %v410 = vsub.f32 %v394, %v403
        %v411 = vsub.f32 %v395, %v403
        %v412 = vsub.f32 %v396, %v408
        %v413 = vsub.f32 %v397, %v408
        %v414 = vmul.f32 %v410, 1.442695
        %v415 = vpow.pop %v414
        %v416 = vmul.f32 %v411, 1.442695
        %v417 = vpow.pop %v416
        %v418 = vmul.f32 %v412, 1.442695
        %v419 = vpow.pop %v418
        %v420 = vmul.f32 %v413, 1.442695
        %v421 = vpow.pop %v420
        %v422 = vld [vmem:[%s313] sm:$0xff]
        %v423 = vld [vmem:[%s313 + $0x8] sm:$0xff]
        %v424 = vld [vmem:[%s313 + $0x10] sm:$0xff]
        %v425 = vld [vmem:[%s313 + $0x18] sm:$0xff]
        %v426 = vld [vmem:[%s313 + $0x20] sm:$0xff]
        %v427 = vld [vmem:[%s313 + $0x28] sm:$0xff]
        %v428 = vld [vmem:[%s313 + $0x30] sm:$0xff]
        %v429 = vld [vmem:[%s313 + $0x38] sm:$0xff]
        %v430 = vmul.f32 %v422, 10.0
        %v431 = vmul.f32 %v423, 10.0
        %v432 = vmul.f32 %v424, 10.0
        %v433 = vmul.f32 %v425, 10.0
        %v434 = vmul.f32 %v426, 10.0
        %v435 = vmul.f32 %v427, 10.0
        %v436 = vmul.f32 %v428, 10.0
        %v437 = vmul.f32 %v429, 10.0
        %v438 = vmax.f32 %v430, %v431
        %439 = vmax.xlane.f32.xlu0 %v438
        %v440 = vpop.xlane.xlu0 %439
        %v441 = vmax.f32 %v432, %v433
        %442 = vmax.xlane.f32.xlu0 %v441
        %v443 = vpop.xlane.xlu0 %442
        %v444 = vmax.f32 %v434, %v435
        %445 = vmax.xlane.f32.xlu0 %v444
        %v446 = vpop.xlane.xlu0 %445
        %v447 = vmax.f32 %v436, %v437
        %448 = vmax.xlane.f32.xlu0 %v447
        %v449 = vpop.xlane.xlu0 %448
        %v450 = vsub.f32 %v430, %v440
        %v451 = vsub.f32 %v431, %v440
        %v452 = vsub.f32 %v432, %v443
        %v453 = vsub.f32 %v433, %v443
        %v454 = vsub.f32 %v434, %v446
        %v455 = vsub.f32 %v435, %v446
        %v456 = vsub.f32 %v436, %v449
        %v457 = vsub.f32 %v437, %v449
        %v458 = vmul.f32 %v450, 1.442695
        %v459 = vpow.pop %v458
        %v460 = vmul.f32 %v451, 1.442695
        %v461 = vpow.pop %v460
        %v462 = vmul.f32 %v452, 1.442695
        %v463 = vpow.pop %v462
        %v464 = vmul.f32 %v453, 1.442695
        %v465 = vpow.pop %v464
        %v466 = vmul.f32 %v454, 1.442695
        %v467 = vpow.pop %v466
        %v468 = vmul.f32 %v455, 1.442695
        %v469 = vpow.pop %v468
        %v470 = vmul.f32 %v456, 1.442695
        %v471 = vpow.pop %v470
        %v472 = vmul.f32 %v457, 1.442695
        %v473 = vpow.pop %v472
        %v474 = vadd.f32 %v459, %v461
        %475 = vadd.xlane.f32.xlu0 %v474
        %v476 = vpop.xlane.xlu0 %475
        %v477 = vadd.f32 %v463, %v465
        %478 = vadd.xlane.f32.xlu0 %v477
        %v479 = vpop.xlane.xlu0 %478
        %v480 = vadd.f32 %v467, %v469
        %481 = vadd.xlane.f32.xlu0 %v480
        %v482 = vpop.xlane.xlu0 %481
        %v483 = vadd.f32 %v471, %v473
        %484 = vadd.xlane.f32.xlu0 %v483
        %v485 = vpop.xlane.xlu0 %484
        %vm486 = vcmask 7168
        %487 = vst.msk [vmem:[%s372] sm:$0xff] %vm486, %v440
        %488 = vst.msk [vmem:[%s372 + $0x8] sm:$0xff] %vm486, %v443
        %489 = vst.msk [vmem:[%s372 + $0x10] sm:$0xff] %vm486, %v446
        %490 = vst.msk [vmem:[%s372 + $0x18] sm:$0xff] %vm486, %v449
        %491 = vst.msk [vmem:[%s377] sm:$0xff] %vm486, %v476
        %492 = vst.msk [vmem:[%s377 + $0x8] sm:$0xff] %vm486, %v479
        %493 = vst.msk [vmem:[%s377 + $0x10] sm:$0xff] %vm486, %v482
        %494 = vst.msk [vmem:[%s377 + $0x18] sm:$0xff] %vm486, %v485
        %v495 = vmul.f32 %v419, %v430
        %v496 = vmul.f32 %v421, %v431
        %v497 = vmul.f32 %v415, %v432
        %v498 = vmul.f32 %v417, %v433
        %v499 = vadd.f32 %v495, %v497
        %v500 = vadd.f32 %v496, %v498
        %v501 = vadd.f32 %v434, %v436
        %v502 = vadd.f32 %v435, %v437
        %v503 = vadd.f32 %v415, %v419
        %v504 = vadd.f32 %v417, %v421
        %v505 = vmul.f32 %v503, %v501
        %v506 = vmul.f32 %v504, %v502
        %v507 = vadd.f32 %v499, %v505
        %v508 = vadd.f32 %v500, %v506
        %v509 = vadd.f32 %v507, %v508
        %510 = vst [vmem:[%s367] sm:$0xff] %v509
        %p511 = scmp.lt.s32.totalorder %s20, 1
        %s512 = scalar_select %p511, %s20, 1
        %s513 = smul.addr %s512, 8
        %s514 = scalar_lea.vmem %s5, %s513
        %p515 = scmp.lt.s32.totalorder %s20, 1
        %s516 = scalar_select %p515, %s20, 1
        %s517 = smul.addr %s516, 4
        %s518 = smul.addr %s517, 8
        %s519 = scalar_lea.vmem %s6, %s518
        %p520 = scmp.lt.s32.totalorder %s20, 1
        %s521 = scalar_select %p520, %s20, 1
        %s522 = smul.addr %s521, 4
        %s523 = smul.addr %s522, 8
        %s524 = scalar_lea.vmem %s7, %s523
        // Predicated region
        $region83: #{_dino_loss_forward.3} parent=73 // pred_check
          %p525 = pneg %p137
        $region84: #{_dino_loss_forward.3} parent=73 // pred_check_branch
          %527 = sbr.rel (%p525) target = $region86
        $region85: #{_dino_loss_forward.3} parent=73 // pred_region
          _
        $region86: #{_dino_loss_forward.3} parent=73 // pred_fallthru
          _
        // Predicated region
        $region87: #{_dino_loss_forward.3} parent=73 // pred_check
          %p528 = pneg %p163
        $region88: #{_dino_loss_forward.3} parent=73 // pred_check_branch
          %530 = sbr.rel (%p528) target = $region90
        $region89: #{_dino_loss_forward.3} parent=73 // pred_region
          _
        $region90: #{_dino_loss_forward.3} parent=73 // pred_fallthru
          _
        // Predicated region
        $region91: #{_dino_loss_forward.3} parent=73 // pred_check
          %p531 = pneg %p189
        $region92: #{_dino_loss_forward.3} parent=73 // pred_check_branch
          %533 = sbr.rel (%p531) target = $region94
        $region93: #{_dino_loss_forward.3} parent=73 // pred_region
          _
        $region94: #{_dino_loss_forward.3} parent=73 // pred_fallthru
          _
      $region74: #{_dino_loss_forward.3} parent=5 // pred_fallthru
        _
      %p534 = scmp.le.s32.totalorder 2, %s15
      // Predicated region
      $region95: #{_dino_loss_forward.3} parent=5 // pred_check
        %p535 = pneg %p534
      $region96: #{_dino_loss_forward.3} parent=5 // pred_check_branch
        %537 = sbr.rel (%p535) target = $region98
      $region97: #{_dino_loss_forward.3} parent=5 // pred_region
        %s538 = ssub.s32 %s15, 2
        // Predicated region
        $region99: #{_dino_loss_forward.3} parent=97 // pred_check
          %p539 = pneg %p143
        $region100: #{_dino_loss_forward.3} parent=97 // pred_check_branch
          %541 = sbr.rel (%p539) target = $region102
        $region101: #{_dino_loss_forward.3} parent=97 // pred_region
          %p542 = scmp.lt.s32.totalorder %s21, 1
          %s543 = scalar_select %p542, %s21, 1
          %s544 = smul.addr %s543, 8
          %s545 = scalar_lea.vmem %s5, %s544
        $region102: #{_dino_loss_forward.3} parent=97 // pred_fallthru
          _
        // Predicated region
        $region103: #{_dino_loss_forward.3} parent=97 // pred_check
          %p546 = pneg %p169
        $region104: #{_dino_loss_forward.3} parent=97 // pred_check_branch
          %548 = sbr.rel (%p546) target = $region106
        $region105: #{_dino_loss_forward.3} parent=97 // pred_region
          %p549 = scmp.lt.s32.totalorder %s21, 1
          %s550 = scalar_select %p549, %s21, 1
          %s551 = smul.addr %s550, 4
          %s552 = smul.addr %s551, 8
          %s553 = scalar_lea.vmem %s6, %s552
        $region106: #{_dino_loss_forward.3} parent=97 // pred_fallthru
          _
        // Predicated region
        $region107: #{_dino_loss_forward.3} parent=97 // pred_check
          %p554 = pneg %p195
        $region108: #{_dino_loss_forward.3} parent=97 // pred_check_branch
          %556 = sbr.rel (%p554) target = $region110
        $region109: #{_dino_loss_forward.3} parent=97 // pred_region
          %p557 = scmp.lt.s32.totalorder %s21, 1
          %s558 = scalar_select %p557, %s21, 1
          %s559 = smul.addr %s558, 4
          %s560 = smul.addr %s559, 8
          %s561 = scalar_lea.vmem %s7, %s560
        $region110: #{_dino_loss_forward.3} parent=97 // pred_fallthru
          _
      $region98: #{_dino_loss_forward.3} parent=5 // pred_fallthru
        _
    $region6: #{_dino_loss_forward.3} parent=1 // loop_footer
      %s19 = sadd.s32 1, %s15
    $region7: #{_dino_loss_forward.3} parent=1 // loop_footer_branch
      %14 = sbr.rel target = $region3
    $region8: #{_dino_loss_forward.3} parent=1 // loop_exit
      _

// kernel: _dino_loss_forward.2
$region0: #{_dino_loss_forward.2}
  #allocation0 [shape = 'u32[]', space=smem, size = 0x4, offset = 0x4, fixed_abs, tag = 'smem constant byte address 0x4 - core index']
  #allocation1 [shape = 'u32[72,128]{1,0:T(1,128)}', space=vmem, size = 0x9000, scoped, tag = 'internal scratch']
  #allocation2 [shape = 's32[1]{0}', space=sflag, size = 0x4, scoped, tag = 'scoped memory for _dino_loss_forward.2']
  #allocation3 [shape = 'f32[1]{0:T(128)S(6)}', space=smem, size = 0x200, scoped, tag = 'prefetched SMEM operand 0']
  %s0 = inlined_call_operand.<no memory space> [shape: f32[1], index: 0, kind: input, shape index: {}]
  %s1 = inlined_call_operand.hbm [shape: f32[16,512], index: 1, kind: input, shape index: {}]
  %s2 = inlined_call_operand.vmem [shape: f32[1,512], index: 2, kind: input, shape index: {}]
  %s3 = inlined_call_operand.vmem [shape: f32[2,16,1], index: 3, kind: output, shape index: {0}]
  %s4 = inlined_call_operand.vmem [shape: f32[2,16,1], index: 4, kind: output, shape index: {1}]
  %s5 = inlined_call_operand.hbm [shape: f32[1,512], index: 5, kind: output, shape index: {2}]
  %6 = xla_tuple %s3, %s4, %s5
  %s7 = sld [smem:[#allocation0]]
  $region61: #{_dino_loss_forward.2} parent=0
    _
  %s9 = ssub.s32 1, %s7
  %s10 = scalar_select 0, %s9, %s7
  %11 = sst [smem:[#allocation3]] %s0
  $region1: #{_dino_loss_forward.2} parent=0
    #allocation4 [shape = 'u8[32768]{0}', space=vmem, size = 0x8000, scoped, tag = 'input window, operand 1']
    #allocation5 [shape = 's32[2]{0}', space=sflag, size = 0x8, scoped, tag = 'scoped memory for _dino_loss_forward.2']
    #allocation6 [shape = 's32[2]{0}', space=sflag, size = 0x8, scoped, tag = 'scoped memory for _dino_loss_forward.2']
    #allocation7 [shape = 'u8[2048]{0}', space=vmem, size = 0x800, scoped, tag = 'output window, operand 2']
    %12 = vsyncpa [#allocation5], 0
    %s13 = scalar_lea.sflag [#allocation5], 1
    %14 = vsyncpa %s13, 0
    %15 = vsyncpa [#allocation6], 0
    %s16 = scalar_lea.sflag [#allocation6], 1
    %17 = vsyncpa %s16, 0
    loop: start=0, step=1, limit=4
    $region2: #{_dino_loss_forward.2} parent=1 // loop_pre_header
      _
    $region3: #{_dino_loss_forward.2} parent=1 // loop_header
      %s19 = sphi 0, %s23
      %p20 = scmp.ge.s32.totalorder %s19, 4
      %s29 = sphi 0, %s31
      %s32 = sphi 0, %s29
      %s33 = sphi 0, %s32
      %s49 = sphi 0, %s33
      %s55 = sphi 0, %s57
      %s58 = sphi 0, %s55
      %s59 = sphi 0, %s58
      %s75 = sphi 0, %s59
      %s81 = sphi 0, %s83
      %s84 = sphi 0, %s81
      %s85 = sphi 0, %s84
      %s101 = sphi 0, %s85
      %s107 = sphi 0, %s109
      %s110 = sphi 0, %s107
      %s111 = sphi 0, %s110
      %s127 = sphi 0, %s111
      %s133 = sphi 0, %s135
      %s136 = sphi 0, %s133
      %s137 = sphi 0, %s136
      %s153 = sphi 0, %s137
    $region4: #{_dino_loss_forward.2} parent=1 // loop_header_branch
      %22 = sbr.rel (%p20) target = $region8
    $region5: #{_dino_loss_forward.2} parent=1 // loop_body
      %s24 = ssub.s32 %s19, 1
      %s25 = ssub.s32 %s19, 2
      %s26 = sadd.s32 %s19, 1
      %s27 = ssub.s32 %s19, %s26
      %p28 = scmp.eq.s32.totalorder %s27, 0
      %s30 = sadd.s32 %s29, 1
      %s31 = scalar_select %p28, %s29, %s30
      %p34 = pneg %p28
      %p35 = scmp.eq.s32.totalorder %s19, 1
      %p36 = por %p34, %p35
      %p37 = scmp.ne.s32.totalorder %s29, %s32
      %p38 = scmp.eq.s32.totalorder %s19, 0
      %p39 = por %p37, %p38
      %p40 = scmp.ne.s32.totalorder %s29, %s32
      %p41 = scmp.eq.s32.totalorder %s24, 1
      %p42 = por %p40, %p41
      %p43 = scmp.ne.s32.totalorder %s32, %s33
      %p44 = scmp.eq.s32.totalorder %s24, 0
      %p45 = por %p43, %p44
      %p46 = scmp.ne.s32.totalorder %s32, %s33
      %p47 = scmp.eq.s32.totalorder %s25, 1
      %p48 = por %p46, %p47
      %p50 = scmp.ne.s32.totalorder %s33, %s49
      %p51 = scmp.eq.s32.totalorder %s25, 0
      %p52 = por %p50, %p51
      %s53 = ssub.s32 %s19, %s26
      %p54 = scmp.eq.s32.totalorder %s53, 0
      %s56 = sadd.s32 %s55, 1
      %s57 = scalar_select %p54, %s55, %s56
      %p60 = pneg %p54
      %p61 = scmp.eq.s32.totalorder %s19, 1
      %p62 = por %p60, %p61
      %p63 = scmp.ne.s32.totalorder %s55, %s58
      %p64 = scmp.eq.s32.totalorder %s19, 0
      %p65 = por %p63, %p64
      %p66 = scmp.ne.s32.totalorder %s55, %s58
      %p67 = scmp.eq.s32.totalorder %s24, 1
      %p68 = por %p66, %p67
      %p69 = scmp.ne.s32.totalorder %s58, %s59
      %p70 = scmp.eq.s32.totalorder %s24, 0
      %p71 = por %p69, %p70
      %p72 = scmp.ne.s32.totalorder %s58, %s59
      %p73 = scmp.eq.s32.totalorder %s25, 1
      %p74 = por %p72, %p73
      %p76 = scmp.ne.s32.totalorder %s59, %s75
      %p77 = scmp.eq.s32.totalorder %s25, 0
      %p78 = por %p76, %p77
      %s79 = ssub.s32 %s19, %s26
      %p80 = scmp.eq.s32.totalorder %s79, 0
      %s82 = sadd.s32 %s81, 1
      %s83 = scalar_select %p80, %s81, %s82
      %p86 = pneg %p80
      %p87 = scmp.eq.s32.totalorder %s19, 1
      %p88 = por %p86, %p87
      %p89 = scmp.ne.s32.totalorder %s81, %s84
      %p90 = scmp.eq.s32.totalorder %s19, 0
      %p91 = por %p89, %p90
      %p92 = scmp.ne.s32.totalorder %s81, %s84
      %p93 = scmp.eq.s32.totalorder %s24, 1
      %p94 = por %p92, %p93
      %p95 = scmp.ne.s32.totalorder %s84, %s85
      %p96 = scmp.eq.s32.totalorder %s24, 0
      %p97 = por %p95, %p96
      %p98 = scmp.ne.s32.totalorder %s84, %s85
      %p99 = scmp.eq.s32.totalorder %s25, 1
      %p100 = por %p98, %p99
      %p102 = scmp.ne.s32.totalorder %s85, %s101
      %p103 = scmp.eq.s32.totalorder %s25, 0
      %p104 = por %p102, %p103
      %s105 = ssub.s32 %s19, %s26
      %p106 = scmp.eq.s32.totalorder %s105, 0
      %s108 = sadd.s32 %s107, 1
      %s109 = scalar_select %p106, %s107, %s108
      %p112 = pneg %p106
      %p113 = scmp.eq.s32.totalorder %s19, 1
      %p114 = por %p112, %p113
      %p115 = scmp.ne.s32.totalorder %s107, %s110
      %p116 = scmp.eq.s32.totalorder %s19, 0
      %p117 = por %p115, %p116
      %p118 = scmp.ne.s32.totalorder %s107, %s110
      %p119 = scmp.eq.s32.totalorder %s24, 1
      %p120 = por %p118, %p119
      %p121 = scmp.ne.s32.totalorder %s110, %s111
      %p122 = scmp.eq.s32.totalorder %s24, 0
      %p123 = por %p121, %p122
      %p124 = scmp.ne.s32.totalorder %s110, %s111
      %p125 = scmp.eq.s32.totalorder %s25, 1
      %p126 = por %p124, %p125
      %p128 = scmp.ne.s32.totalorder %s111, %s127
      %p129 = scmp.eq.s32.totalorder %s25, 0
      %p130 = por %p128, %p129
      %s131 = ssub.s32 %s19, %s26
      %p132 = scmp.eq.s32.totalorder %s131, 0
      %s134 = sadd.s32 %s133, 1
      %s135 = scalar_select %p132, %s133, %s134
      %p138 = pneg %p132
      %p139 = scmp.eq.s32.totalorder %s19, 1
      %p140 = por %p138, %p139
      %p141 = scmp.ne.s32.totalorder %s133, %s136
      %p142 = scmp.eq.s32.totalorder %s19, 0
      %p143 = por %p141, %p142
      %p144 = scmp.ne.s32.totalorder %s133, %s136
      %p145 = scmp.eq.s32.totalorder %s24, 1
      %p146 = por %p144, %p145
      %p147 = scmp.ne.s32.totalorder %s136, %s137
      %p148 = scmp.eq.s32.totalorder %s24, 0
      %p149 = por %p147, %p148
      %p150 = scmp.ne.s32.totalorder %s136, %s137
      %p151 = scmp.eq.s32.totalorder %s25, 1
      %p152 = por %p150, %p151
      %p154 = scmp.ne.s32.totalorder %s137, %s153
      %p155 = scmp.eq.s32.totalorder %s25, 0
      %p156 = por %p154, %p155
      %p157 = scmp.le.s32.totalorder 1, %s19
      %p158 = scmp.lt.s32.totalorder %s19, 3
      %p159 = pnand %p157, %p158
      %p160 = pneg %p159
      // Predicated region
      $region9: #{_dino_loss_forward.2} parent=5 // pred_check
        _
      $region10: #{_dino_loss_forward.2} parent=5 // pred_check_branch
        %162 = sbr.rel (%p159) target = $region12
      $region11: #{_dino_loss_forward.2} parent=5 // pred_region
        %s163 = ssub.s32 %s19, 1
      $region12: #{_dino_loss_forward.2} parent=5 // pred_fallthru
        _
      %p164 = scmp.lt.s32.totalorder %s19, 2
      // Predicated region
      $region13: #{_dino_loss_forward.2} parent=5 // pred_check
        %p165 = pneg %p164
      $region14: #{_dino_loss_forward.2} parent=5 // pred_check_branch
        %167 = sbr.rel (%p165) target = $region16
      $region15: #{_dino_loss_forward.2} parent=5 // pred_region
        // Predicated region
        $region17: #{_dino_loss_forward.2} parent=15 // pred_check
          %p168 = pneg %p39
        $region18: #{_dino_loss_forward.2} parent=15 // pred_check_branch
          %170 = sbr.rel (%p168) target = $region20
        $region19: #{_dino_loss_forward.2} parent=15 // pred_region
          %s171 = sand.u32 %s29, 1
          %s172 = scalar_lea.sflag [#allocation5], %s171
          %s173 = sand.u32 %s29, 1
          %s174 = smul.addr %s173, 32
          %s175 = scalar_lea.vmem [#allocation4], %s174
          %s176 = smul.u32 2, %s19
          %178 = vsyncadd %s172, 0
          %s179 = smul.addr %s176, 8
          %s180 = scalar_lea.hbm %s1, %s179
          %s181 = sshll.u32 %s180, 4
          %s182 = int_to_ptr.hbm [resolvable:$true] %s181
          %s183 = sshll.u32 %s175, 4
          %s184 = int_to_ptr.vmem [resolvable:$true] %s183
          %189 = dma.hbm_to_vmem [thread:$0]  %s182, 512, %s184, %s172, 512, 256, 16
        $region20: #{_dino_loss_forward.2} parent=15 // pred_fallthru
          _
        // Predicated region
        $region21: #{_dino_loss_forward.2} parent=15 // pred_check
          %p190 = pneg %p65
        $region22: #{_dino_loss_forward.2} parent=15 // pred_check_branch
          %192 = sbr.rel (%p190) target = $region24
        $region23: #{_dino_loss_forward.2} parent=15 // pred_region
          %s193 = smul.u32 2, %s19
          %p194 = scmp.lt.s32.totalorder %s193, 3
          %s195 = scalar_select %p194, %s193, 3
          %s196 = scalar_lea.vmem %s2, %s195
          %s197 = smul.u32 2, %s19
        $region24: #{_dino_loss_forward.2} parent=15 // pred_fallthru
          _
      $region16: #{_dino_loss_forward.2} parent=5 // pred_fallthru
        _
      %p198 = scmp.le.s32.totalorder 1, %s19
      %p199 = scmp.lt.s32.totalorder %s19, 3
      %p200 = pnand %p198, %p199
      %p201 = pneg %p200
      // Predicated region
      $region25: #{_dino_loss_forward.2} parent=5 // pred_check
        _
      $region26: #{_dino_loss_forward.2} parent=5 // pred_check_branch
        %203 = sbr.rel (%p200) target = $region28
      $region27: #{_dino_loss_forward.2} parent=5 // pred_region
        %s204 = ssub.s32 %s19, 1
        %s205 = sand.u32 %s32, 1
        %s206 = scalar_lea.sflag [#allocation5], %s205
        %s207 = sand.u32 %s32, 1
        %s208 = smul.addr %s207, 32
        %s209 = scalar_lea.vmem [#allocation4], %s208
        // Predicated region
        $region29: #{_dino_loss_forward.2} parent=27 // pred_check
          %p210 = pneg %p45
        $region30: #{_dino_loss_forward.2} parent=27 // pred_check_branch
          %212 = sbr.rel (%p210) target = $region32
        $region31: #{_dino_loss_forward.2} parent=27 // pred_region
          %214 = dma.done %s206, 512
        $region32: #{_dino_loss_forward.2} parent=27 // pred_fallthru
          _
        %s215 = sand.u32 %s32, 1
        %s216 = scalar_lea.sflag [#allocation5], %s215
        %s217 = sand.u32 %s32, 1
        %s218 = smul.addr %s217, 32
        %s219 = scalar_lea.vmem [#allocation4], %s218
        %p220 = pneg %p45
        %p221 = pneg %p42
        %s222 = smul.u32 2, %s24
        %p223 = scmp.lt.s32.totalorder %s222, 3
        %s224 = scalar_select %p223, %s222, 3
        %s225 = scalar_lea.vmem %s2, %s224
        %p226 = pneg %p71
        %p227 = pneg %p68
        %p228 = pneg %p97
        %p229 = pneg %p94
        %p230 = scmp.lt.s32.totalorder %s24, 1
        %s231 = scalar_select %p230, %s24, 1
        %s232 = smul.addr %s231, 2
        %s233 = smul.addr %s232, 8
        %s234 = scalar_lea.vmem %s3, %s233
        %p235 = pneg %p123
        %p236 = pneg %p120
        %p237 = scmp.lt.s32.totalorder %s24, 1
        %s238 = scalar_select %p237, %s24, 1
        %s239 = smul.addr %s238, 2
        %s240 = smul.addr %s239, 8
        %s241 = scalar_lea.vmem %s4, %s240
        %p242 = pneg %p149
        %p243 = pneg %p146
        %s244 = sand.u32 %s136, 1
        %s245 = scalar_lea.sflag [#allocation6], %s244
        %s246 = sand.u32 %s136, 1
        %s247 = smul.addr %s246, 2
        %s248 = scalar_lea.vmem [#allocation7], %s247
        %s249 = smul.u32 2, %s24
        %s250 = smul.u32 2, %s24
        %p251 = scmp.lt.s32.totalorder %s250, 3
        %s252 = scalar_select %p251, %s250, 3
        %s253 = scalar_lea.vmem %s2, %s252
        %s254 = smul.u32 2, %s24
        %p255 = scmp.lt.s32.totalorder %s24, 1
        %s256 = scalar_select %p255, %s24, 1
        %s257 = smul.addr %s256, 2
        %s258 = smul.addr %s257, 8
        %s259 = scalar_lea.vmem %s3, %s258
        %p260 = scmp.lt.s32.totalorder %s24, 1
        %s261 = scalar_select %p260, %s24, 1
        %s262 = smul.addr %s261, 2
        %s263 = smul.addr %s262, 8
        %s264 = scalar_lea.vmem %s4, %s263
        %s265 = smul.u32 2, %s24
        %v266 = vld [vmem:[%s253] sm:$0x3]
        %v267 = vld [vmem:[%s209] sm:$0xff]
        %v268 = vld [vmem:[%s209 + $0x8] sm:$0xff]
        %v269 = vld [vmem:[%s209 + $0x10] sm:$0xff]
        %v270 = vld [vmem:[%s209 + $0x18] sm:$0xff]
        %v272 = vperm.slane %v266, 0
        %v273 = vperm.slane %v266, 1
        %v276 = vsub.f32 %v267, %v272
        %v277 = vsub.f32 %v268, %v273
        %v278 = vsub.f32 %v269, %v272
        %v279 = vsub.f32 %v270, %v273
        %s280 = sld [smem:[#allocation3]]
        %v281 = vstv %s280
        %v282 = vmul.f32 %v276, %v281
        %v283 = vmul.f32 %v277, %v281
        %v284 = vmul.f32 %v278, %v281
        %v285 = vmul.f32 %v279, %v281
        %v286 = vadd.f32 %v267, %v269
        %v287 = vrot.slane %v286, 4
        %v288 = vadd.f32 %v286, %v287
        %v289 = vrot.slane %v288, 2
        %v290 = vadd.f32 %v288, %v289
        %v291 = vrot.slane %v290, 1
        %v292 = vadd.f32 %v290, %v291
        %v293 = vadd.f32 %v268, %v270
        %v294 = vrot.slane %v293, 4
        %v295 = vadd.f32 %v293, %v294
        %v296 = vrot.slane %v295, 2
        %v297 = vadd.f32 %v295, %v296
        %v298 = vrot.slane %v297, 1
        %v299 = vadd.f32 %v297, %v298
        %v300 = vmul.f32 %v292, 0.0625
        %v301 = vmul.f32 %v299, 0.0625
        %v302 = vmul.f32 %v266, 0.9
        %v303 = vmul.f32 %v300, 0.1
        %v304 = vmul.f32 %v301, 0.1
        %v307 = vrot.slane %v304, 7
        %vm308 = vcmask 1040384
        %v309 = vsel %vm308, %v303, %v307
        %v311 = vadd.f32 %v302, %v309
        %v312 = vlaneseq
        %vm313 = vcmp.ge.s32.totalorder %v312, 0
        %vm314 = vcmp.lt.s32.totalorder %v312, 256
        %vm315 = vmand %vm313, %vm314
        %316 = vst.msk [vmem:[%s248] sm:$0x3] %vm315, %v311
        %v317 = vmax.f32 %v282, %v283
        %318 = vmax.xlane.f32.xlu0 %v317
        %v319 = vpop.xlane.xlu0 %318
        %v320 = vmax.f32 %v284, %v285
        %321 = vmax.xlane.f32.xlu0 %v320
        %v322 = vpop.xlane.xlu0 %321
        %v323 = vsub.f32 %v282, %v319
        %v324 = vsub.f32 %v283, %v319
        %v325 = vsub.f32 %v284, %v322
        %v326 = vsub.f32 %v285, %v322
        %v327 = vmul.f32 %v323, 1.442695
        %v328 = vpow.pop %v327
        %v329 = vmul.f32 %v324, 1.442695
        %v330 = vpow.pop %v329
        %v331 = vmul.f32 %v325, 1.442695
        %v332 = vpow.pop %v331
        %v333 = vmul.f32 %v326, 1.442695
        %v334 = vpow.pop %v333
        %v335 = vadd.f32 %v328, %v330
        %336 = vadd.xlane.f32.xlu0 %v335
        %v337 = vpop.xlane.xlu0 %336
        %v338 = vadd.f32 %v332, %v334
        %339 = vadd.xlane.f32.xlu0 %v338
        %v340 = vpop.xlane.xlu0 %339
        %vm341 = vcmask 7168
        %342 = vst.msk [vmem:[%s259] sm:$0xff] %vm341, %v319
        %343 = vst.msk [vmem:[%s259 + $0x8] sm:$0xff] %vm341, %v322
        %344 = vst.msk [vmem:[%s264] sm:$0xff] %vm341, %v337
        %345 = vst.msk [vmem:[%s264 + $0x8] sm:$0xff] %vm341, %v340
        %p346 = scmp.lt.s32.totalorder %s24, 1
        %s347 = scalar_select %p346, %s24, 1
        %s348 = smul.addr %s347, 2
        %s349 = smul.addr %s348, 8
        %s350 = scalar_lea.vmem %s3, %s349
        %p351 = scmp.lt.s32.totalorder %s24, 1
        %s352 = scalar_select %p351, %s24, 1
        %s353 = smul.addr %s352, 2
        %s354 = smul.addr %s353, 8
        %s355 = scalar_lea.vmem %s4, %s354
        %s356 = sand.u32 %s136, 1
        %s357 = scalar_lea.sflag [#allocation6], %s356
        %s358 = sand.u32 %s136, 1
        %s359 = smul.addr %s358, 2
        %s360 = scalar_lea.vmem [#allocation7], %s359
        // Predicated region
        $region33: #{_dino_loss_forward.2} parent=27 // pred_check
          %p361 = pneg %p94
        $region34: #{_dino_loss_forward.2} parent=27 // pred_check_branch
          %363 = sbr.rel (%p361) target = $region36
        $region35: #{_dino_loss_forward.2} parent=27 // pred_region
          _
        $region36: #{_dino_loss_forward.2} parent=27 // pred_fallthru
          _
        // Predicated region
        $region37: #{_dino_loss_forward.2} parent=27 // pred_check
          %p364 = pneg %p120
        $region38: #{_dino_loss_forward.2} parent=27 // pred_check_branch
          %366 = sbr.rel (%p364) target = $region40
        $region39: #{_dino_loss_forward.2} parent=27 // pred_region
          _
        $region40: #{_dino_loss_forward.2} parent=27 // pred_fallthru
          _
        // Predicated region
        $region41: #{_dino_loss_forward.2} parent=27 // pred_check
          %p367 = pneg %p146
        $region42: #{_dino_loss_forward.2} parent=27 // pred_check_branch
          %369 = sbr.rel (%p367) target = $region44
        $region43: #{_dino_loss_forward.2} parent=27 // pred_region
          %s370 = smul.u32 2, %s24
          %372 = vsyncadd %s357, 0
          %s373 = scalar_lea.hbm %s5, %s370
          %s375 = sshll.u32 %s360, 4
          %s376 = int_to_ptr.vmem [resolvable:$true] %s375
          %s377 = sshll.u32 %s373, 4
          %s378 = int_to_ptr.hbm [resolvable:$true] %s377
          %380 = dma.vmem_to_hbm [thread:$0]  %s376, 32, %s378, %s357
        $region44: #{_dino_loss_forward.2} parent=27 // pred_fallthru
          _
      $region28: #{_dino_loss_forward.2} parent=5 // pred_fallthru
        _
      %p381 = scmp.le.s32.totalorder 2, %s19
      // Predicated region
      $region45: #{_dino_loss_forward.2} parent=5 // pred_check
        %p382 = pneg %p381
      $region46: #{_dino_loss_forward.2} parent=5 // pred_check_branch
        %384 = sbr.rel (%p382) target = $region48
      $region47: #{_dino_loss_forward.2} parent=5 // pred_region
        %s385 = ssub.s32 %s19, 2
        // Predicated region
        $region49: #{_dino_loss_forward.2} parent=47 // pred_check
          %p386 = pneg %p100
        $region50: #{_dino_loss_forward.2} parent=47 // pred_check_branch
          %388 = sbr.rel (%p386) target = $region52
        $region51: #{_dino_loss_forward.2} parent=47 // pred_region
          %p389 = scmp.lt.s32.totalorder %s25, 1
          %s390 = scalar_select %p389, %s25, 1
          %s391 = smul.addr %s390, 2
          %s392 = smul.addr %s391, 8
          %s393 = scalar_lea.vmem %s3, %s392
        $region52: #{_dino_loss_forward.2} parent=47 // pred_fallthru
          _
        // Predicated region
        $region53: #{_dino_loss_forward.2} parent=47 // pred_check
          %p394 = pneg %p126
        $region54: #{_dino_loss_forward.2} parent=47 // pred_check_branch
          %396 = sbr.rel (%p394) target = $region56
        $region55: #{_dino_loss_forward.2} parent=47 // pred_region
          %p397 = scmp.lt.s32.totalorder %s25, 1
          %s398 = scalar_select %p397, %s25, 1
          %s399 = smul.addr %s398, 2
          %s400 = smul.addr %s399, 8
          %s401 = scalar_lea.vmem %s4, %s400
        $region56: #{_dino_loss_forward.2} parent=47 // pred_fallthru
          _
        // Predicated region
        $region57: #{_dino_loss_forward.2} parent=47 // pred_check
          %p402 = pneg %p152
        $region58: #{_dino_loss_forward.2} parent=47 // pred_check_branch
          %404 = sbr.rel (%p402) target = $region60
        $region59: #{_dino_loss_forward.2} parent=47 // pred_region
          %s405 = sand.u32 %s137, 1
          %s406 = scalar_lea.sflag [#allocation6], %s405
          %s407 = sand.u32 %s137, 1
          %s408 = smul.addr %s407, 2
          %s409 = scalar_lea.vmem [#allocation7], %s408
          %411 = dma.done %s406, 32
        $region60: #{_dino_loss_forward.2} parent=47 // pred_fallthru
          _
      $region48: #{_dino_loss_forward.2} parent=5 // pred_fallthru
        _
    $region6: #{_dino_loss_forward.2} parent=1 // loop_footer
      %s23 = sadd.s32 1, %s19
    $region7: #{_dino_loss_forward.2} parent=1 // loop_footer_branch
      %18 = sbr.rel target = $region3
    $region8: #{_dino_loss_forward.2} parent=1 // loop_exit
      _
    %412 = vsyncpa [#allocation5], 1
    %s413 = scalar_lea.sflag [#allocation5], 1
    %414 = vsyncpa %s413, 1
    %415 = vsyncpa [#allocation6], 1
    %s416 = scalar_lea.sflag [#allocation6], 1
    %417 = vsyncpa %s416, 1

</llo_original>
